<compile_context>
chip_gen: v6e
topology: v6e:2x2x1
jax: 0.10.0
libtpu: 0.0.40
codegen_flags: <defaults>
</compile_context>

<pallas_src>
import jax
import jax.numpy as jnp
from jax.experimental import pallas as pl
from jax.experimental.pallas import tpu as pltpu

# ---- CenterEstimator default hyper-parameters (args=dict()) -----------------
SCALE_R = 1024.0            # scale_r default
NUM_VECTOR_FIELDS = 3       # init_output() asserts >= 3; minimal valid value
MAX_NUM_CENTERS = 16 * 128  # 2048
# use_log_r_base = 'exp'  ->  inverse_log_r_fn(x) = exp(x) - 1

TARGET_BLOCK_BYTES = 1 << 20      # ~1 MiB per VMEM block => ~12 MiB double-buffered
VMEM_LIMIT_BYTES = 32 * 1024 * 1024


def _largest_divisor_leq(n, cap):
    cap = max(1, min(n, cap))
    for d in range(cap, 0, -1):
        if n % d == 0:
            return d
    return 1


# ----------------------------- kernels ---------------------------------------

def _prep_kernel_lanes(s_in, c_in, r_in, s_out, c_out, r_out):
    """Lane-dense path. Each ref is a (TB, 1, L) tile of one channel."""
    s_out[...] = s_in[...]
    c_out[...] = c_in[...]
    # inverse_log_r_fn(scale_r_fn(R)) with defaults: exp(1024 * R) - 1.
    # Computed in f32 (exact parity with torch.exp(x) - 1; EUP-friendly on all
    # generations even for bf16 inputs), cast back to the output dtype.
    r = r_in[...].astype(jnp.float32)
    r_out[...] = (jnp.exp(r * SCALE_R) - 1.0).astype(r_out.dtype)


def _prep_kernel_nchw(x_ref, s_out, c_out, r_out):
    """Fallback path (H*W not a multiple of 128). x_ref is (TB, C, H*W)."""
    x = x_ref[...]
    s_out[...] = x[:, 0:1, :]
    c_out[...] = x[:, 1:2, :]
    r = x[:, 2:3, :].astype(jnp.float32)
    r_out[...] = (jnp.exp(r * SCALE_R) - 1.0).astype(r_out.dtype)


# ----------------------------- wrapper ----------------------------------------

def center_estimator_forward(x):
    """Pallas implementation of CenterEstimator.forward (eval path, no GT).

    Returns a dict mirroring the PyTorch module:
      output         : (B, C, H, W)  pass-through of the input (no copy)
      center_pred    : (B, MAX_NUM_CENTERS, 5) packed center predictions
      S, C, R, M, cls_mask : intermediate per-pixel tensors (B, 1, H, W)
    """
    B, C, H, W = x.shape
    assert C >= NUM_VECTOR_FIELDS
    HW = H * W
    itemsize = jnp.dtype(x.dtype).itemsize
    max_elems = max(128, TARGET_BLOCK_BYTES // itemsize)

    out_chan = jax.ShapeDtypeStruct((B, 1, HW), x.dtype)

    if HW % 128 == 0:
        # ---- lane-dense fast path ------------------------------------------
        # NCHW is contiguous, so folding (C, H, W) into one flat minor axis is
        # a free reshape.  Channel k then lives at flat offsets [k*HW, (k+1)*HW),
        # so one BlockSpec window per used channel DMAs exactly 3 of C channels.
        xf = x.reshape(B, 1, C * HW)

        # Spatial tile L: divisor of HW, multiple of 128, <= ~TARGET_BLOCK_BYTES.
        m = HW // 128
        d = max(1, min(m, max_elems // 128))
        while m % d:
            d -= 1
        L = 128 * d
        n_l = HW // L

        # Batch tile: divisor of B, keep each block <= ~TARGET_BLOCK_BYTES.
        tb_cap = max(1, min(B, max_elems // L))
        TB = _largest_divisor_leq(B, tb_cap)
        n_b = B // TB

        def chan_in_spec(k):
            # block index along the flat axis = channel offset + spatial tile.
            return pl.BlockSpec(
                (TB, 1, L), lambda b, t, k=k: (b, 0, (k * HW) // L + t))

        out_spec = pl.BlockSpec((TB, 1, L), lambda b, t: (b, 0, t))

        S, Cc, R = pl.pallas_call(
            _prep_kernel_lanes,
            out_shape=(out_chan, out_chan, out_chan),
            grid=(n_b, n_l),
            in_specs=[chan_in_spec(0), chan_in_spec(1), chan_in_spec(2)],
            out_specs=(out_spec, out_spec, out_spec),
            compiler_params=pltpu.CompilerParams(
                dimension_semantics=("parallel", "parallel"),
                vmem_limit_bytes=VMEM_LIMIT_BYTES),
        )(xf, xf, xf)
    else:
        # ---- fallback path ---------------------------------------------------
        # H*W is not a multiple of 128: use full-extent trailing dims (always a
        # legal block shape).  Reads all C channels of the batch tile.
        xf = x.reshape(B, C, HW)
        tb_cap = max(1, max_elems // max(C * HW, 1))
        TB = _largest_divisor_leq(B, tb_cap)
        n_b = B // TB

        S, Cc, R = pl.pallas_call(
            _prep_kernel_nchw,
            out_shape=(out_chan, out_chan, out_chan),
            grid=(n_b,),
            in_specs=[pl.BlockSpec((TB, C, HW), lambda b: (b, 0, 0))],
            out_specs=(pl.BlockSpec((TB, 1, HW), lambda b: (b, 0, 0)),) * 3,
            compiler_params=pltpu.CompilerParams(
                dimension_semantics=("parallel",),
                vmem_limit_bytes=VMEM_LIMIT_BYTES),
        )(xf)

    S = S.reshape(B, 1, H, W)
    Cc = Cc.reshape(B, 1, H, W)
    R = R.reshape(B, 1, H, W)

    # zeros_like(S) — produced outside the kernel (cheap XLA memset, no HBM
    # read and no kernel VMEM buffers wasted on constant outputs).
    M = jnp.zeros_like(S)
    cls_mask = jnp.zeros_like(S)

    # TODO(synk): Conv1dMultiscaleLocalization / Conv2dDilatedLocalization are
    # external modules not defined in center_estimator.py, so the multiscale
    # localization conv + local-max search (conv_resp, res) and the host-side
    # numpy lexsort / ignore-region filtering are not reproduced here.  With no
    # detected centers, _pack_center_predictions yields an all-zero tensor.
    center_pred = jnp.zeros((B, MAX_NUM_CENTERS, 5), dtype=jnp.float32)

    return dict(
        output=x,            # pass-through, no copy through the kernel
        center_pred=center_pred,
        S=S,
        C=Cc,
        R=R,
        M=M,
        cls_mask=cls_mask,
    )


if __name__ == "__main__":
    key = jax.random.PRNGKey(0)
    B, C, H, W = 2, 4, 16, 16
    # Small magnitudes so exp(1024 * R) stays finite (same math as PyTorch).
    x = jax.random.normal(key, (B, C, H, W), dtype=jnp.float32) * 1e-3

    result = center_estimator_forward(x)
    jax.block_until_ready(result)

    # Reference check against plain JAX semantics (matches the PyTorch module).
    ref_R = jnp.exp(x[:, 2:3] * SCALE_R) - 1.0
    assert jnp.allclose(result["output"], x)
    assert jnp.allclose(result["S"], x[:, 0:1])
    assert jnp.allclose(result["C"], x[:, 1:2])
    assert jnp.allclose(result["R"], ref_R, rtol=1e-5, atol=1e-5)
    assert float(jnp.abs(result["M"]).sum()) == 0.0
    assert float(jnp.abs(result["cls_mask"]).sum()) == 0.0
    assert result["center_pred"].shape == (B, MAX_NUM_CENTERS, 5)

    print("KERNEL_OK")
</pallas_src>

<mosaic_0001>
module attributes {stable_mosaic.version = 11 : i64} {
  func.func @_prep_kernel_lanes(%arg0: i32, %arg1: i32, %arg2: memref<2x1x256xf32, #tpu.memory_space<vmem>>, %arg3: memref<2x1x256xf32, #tpu.memory_space<vmem>>, %arg4: memref<2x1x256xf32, #tpu.memory_space<vmem>>, %arg5: memref<2x1x256xf32, #tpu.memory_space<vmem>>, %arg6: memref<2x1x256xf32, #tpu.memory_space<vmem>>, %arg7: memref<2x1x256xf32, #tpu.memory_space<vmem>>) attributes {dimension_semantics = [#tpu.dimension_semantics<parallel>, #tpu.dimension_semantics<parallel>], iteration_bounds = array<i64: 1, 1>, scalar_prefetch = 0 : i64, scratch_operands = 0 : i64, tpu.core_type = #tpu.core_type<tc>, window_params = [{transform_indices = @transform_0, window_bounds = array<i64: 2, 1, 256>}, {transform_indices = @transform_1, window_bounds = array<i64: 2, 1, 256>}, {transform_indices = @transform_2, window_bounds = array<i64: 2, 1, 256>}, {transform_indices = @transform_3, window_bounds = array<i64: 2, 1, 256>}, {transform_indices = @transform_4, window_bounds = array<i64: 2, 1, 256>}, {transform_indices = @transform_5, window_bounds = array<i64: 2, 1, 256>}]} {
    %c0 = arith.constant 0 : index
    %c0_0 = arith.constant 0 : index
    %c0_1 = arith.constant 0 : index
    %0 = vector.load %arg2[%c0, %c0_0, %c0_1] : memref<2x1x256xf32, #tpu.memory_space<vmem>>, vector<2x1x256xf32>
    %c0_2 = arith.constant 0 : index
    %c0_3 = arith.constant 0 : index
    %c0_4 = arith.constant 0 : index
    %1 = vector.load %arg5[%c0_2, %c0_3, %c0_4] : memref<2x1x256xf32, #tpu.memory_space<vmem>>, vector<2x1x256xf32>
    tpu.vector_store %arg5[%c0_2, %c0_3, %c0_4], %0 {strides = array<i32>} : memref<2x1x256xf32, #tpu.memory_space<vmem>>, vector<2x1x256xf32>,
    %c0_5 = arith.constant 0 : index
    %c0_6 = arith.constant 0 : index
    %c0_7 = arith.constant 0 : index
    %2 = vector.load %arg3[%c0_5, %c0_6, %c0_7] : memref<2x1x256xf32, #tpu.memory_space<vmem>>, vector<2x1x256xf32>
    %c0_8 = arith.constant 0 : index
    %c0_9 = arith.constant 0 : index
    %c0_10 = arith.constant 0 : index
    %3 = vector.load %arg6[%c0_8, %c0_9, %c0_10] : memref<2x1x256xf32, #tpu.memory_space<vmem>>, vector<2x1x256xf32>
    tpu.vector_store %arg6[%c0_8, %c0_9, %c0_10], %2 {strides = array<i32>} : memref<2x1x256xf32, #tpu.memory_space<vmem>>, vector<2x1x256xf32>,
    %c0_11 = arith.constant 0 : index
    %c0_12 = arith.constant 0 : index
    %c0_13 = arith.constant 0 : index
    %4 = vector.load %arg4[%c0_11, %c0_12, %c0_13] : memref<2x1x256xf32, #tpu.memory_space<vmem>>, vector<2x1x256xf32>
    %cst = arith.constant 1.024000e+03 : f32
    %5 = vector.broadcast %cst : f32 to vector<2x1x256xf32>
    %6 = arith.mulf %4, %5 : vector<2x1x256xf32>
    %7 = math.exp %6 : vector<2x1x256xf32>
    %cst_14 = arith.constant 1.000000e+00 : f32
    %8 = vector.broadcast %cst_14 : f32 to vector<2x1x256xf32>
    %9 = arith.subf %7, %8 : vector<2x1x256xf32>
    %c0_15 = arith.constant 0 : index
    %c0_16 = arith.constant 0 : index
    %c0_17 = arith.constant 0 : index
    %10 = vector.load %arg7[%c0_15, %c0_16, %c0_17] : memref<2x1x256xf32, #tpu.memory_space<vmem>>, vector<2x1x256xf32>
    tpu.vector_store %arg7[%c0_15, %c0_16, %c0_17], %9 {strides = array<i32>} : memref<2x1x256xf32, #tpu.memory_space<vmem>>, vector<2x1x256xf32>,
    return
  }
  func.func @transform_0(%arg0: i32, %arg1: i32) -> (i32, i32, i32) {
    %c0_i32 = arith.constant 0 : i32
    %0 = arith.addi %c0_i32, %arg1 : i32
    %c0_i32_0 = arith.constant 0 : i32
    %c0_i32_1 = arith.constant 0 : i32
    return %arg0, %c0_i32_0, %0 : i32, i32, i32
  }
  func.func @transform_1(%arg0: i32, %arg1: i32) -> (i32, i32, i32) {
    %c1_i32 = arith.constant 1 : i32
    %0 = arith.addi %c1_i32, %arg1 : i32
    %c0_i32 = arith.constant 0 : i32
    %c0_i32_0 = arith.constant 0 : i32
    return %arg0, %c0_i32, %0 : i32, i32, i32
  }
  func.func @transform_2(%arg0: i32, %arg1: i32) -> (i32, i32, i32) {
    %c2_i32 = arith.constant 2 : i32
    %0 = arith.addi %c2_i32, %arg1 : i32
    %c0_i32 = arith.constant 0 : i32
    %c0_i32_0 = arith.constant 0 : i32
    return %arg0, %c0_i32, %0 : i32, i32, i32
  }
  func.func @transform_3(%arg0: i32, %arg1: i32) -> (i32, i32, i32) {
    %c0_i32 = arith.constant 0 : i32
    %c0_i32_0 = arith.constant 0 : i32
    return %arg0, %c0_i32, %arg1 : i32, i32, i32
  }
  func.func @transform_4(%arg0: i32, %arg1: i32) -> (i32, i32, i32) {
    %c0_i32 = arith.constant 0 : i32
    %c0_i32_0 = arith.constant 0 : i32
    return %arg0, %c0_i32, %arg1 : i32, i32, i32
  }
  func.func @transform_5(%arg0: i32, %arg1: i32) -> (i32, i32, i32) {
    %c0_i32 = arith.constant 0 : i32
    %c0_i32_0 = arith.constant 0 : i32
    return %arg0, %c0_i32, %arg1 : i32, i32, i32
  }
}

</mosaic_0001>

<llo_original>
// kernel: tpu_custom_call.1
$region0: #{tpu_custom_call.1}
  #allocation0 [shape = 'u32[]', space=smem, size = 0x4, offset = 0x4, fixed_abs, tag = 'smem constant byte address 0x4 - core index']
  #allocation1 [shape = 'u32[144,128]{1,0:T(1,128)}', space=vmem, size = 0x12000, scoped, tag = 'internal scratch']
  %s0 = inlined_call_operand.hbm [shape: f32[2,1,1024], index: 0, kind: input, shape index: {}]
  %s1 = inlined_call_operand.hbm [shape: f32[2,1,1024], index: 1, kind: input, shape index: {}]
  %s2 = inlined_call_operand.hbm [shape: f32[2,1,1024], index: 2, kind: input, shape index: {}]
  %s3 = inlined_call_operand.hbm [shape: f32[2,1,256], index: 3, kind: output, shape index: {0}]
  %s4 = inlined_call_operand.hbm [shape: f32[2,1,256], index: 4, kind: output, shape index: {1}]
  %s5 = inlined_call_operand.hbm [shape: f32[2,1,256], index: 5, kind: output, shape index: {2}]
  %6 = xla_tuple %s3, %s4, %s5
  %s7 = sld [smem:[#allocation0]]
  $region50: #{tpu_custom_call.1} parent=0
    _
  %s9 = ssub.s32 1, %s7
  %s10 = scalar_select 0, %s9, %s7
  $region1: #{tpu_custom_call.1} parent=0
    #allocation2 [shape = 'u8[2048]{0}', space=vmem, size = 0x800, scoped, tag = 'input window, operand 0, single buffered']
    #allocation3 [shape = 's32[1]{0}', space=sflag, size = 0x4, scoped, tag = 'scoped memory for tpu_custom_call.1']
    #allocation4 [shape = 's32[1]{0}', space=sflag, size = 0x4, scoped, tag = 'scoped memory for tpu_custom_call.1']
    #allocation5 [shape = 'u8[2048]{0}', space=vmem, size = 0x800, scoped, tag = 'input window, operand 1, single buffered']
    #allocation6 [shape = 's32[1]{0}', space=sflag, size = 0x4, scoped, tag = 'scoped memory for tpu_custom_call.1']
    #allocation7 [shape = 'u8[2048]{0}', space=vmem, size = 0x800, scoped, tag = 'input window, operand 2, single buffered']
    #allocation8 [shape = 'u8[2048]{0}', space=vmem, size = 0x800, scoped, tag = 'output window, operand 0, single buffered']
    #allocation9 [shape = 'u8[2048]{0}', space=vmem, size = 0x800, scoped, tag = 'output window, operand 1, single buffered']
    #allocation10 [shape = 's32[1]{0}', space=sflag, size = 0x4, scoped, tag = 'scoped memory for tpu_custom_call.1']
    #allocation11 [shape = 'u8[2048]{0}', space=vmem, size = 0x800, scoped, tag = 'output window, operand 2, single buffered']
    %11 = vsyncpa [#allocation3], 0
    %12 = vsyncpa [#allocation6], 0
    %13 = vsyncpa [#allocation4], 0
    %14 = vsyncpa [#allocation10], 0
    // Predicated region
    $region2: #{tpu_custom_call.1} parent=1 // pred_check
      _
    $region3: #{tpu_custom_call.1} parent=1 // pred_check_branch
      %16 = sbr.rel (0) target = $region5
    $region4: #{tpu_custom_call.1} parent=1 // pred_region
      %s18 = ssub.s32 64, 64
      %19 = vsyncadd [#allocation3], %s18
      %s20 = sshll.u32 [#allocation2], 4
      %s21 = int_to_ptr.vmem [resolvable:$true] %s20
      %26 = dma.hbm_to_vmem [thread:$0]  %s0, 64, %s21, [#allocation3], 128, 32, 2
    $region5: #{tpu_custom_call.1} parent=1 // pred_fallthru
      _
    // Predicated region
    $region6: #{tpu_custom_call.1} parent=1 // pred_check
      _
    $region7: #{tpu_custom_call.1} parent=1 // pred_check_branch
      %28 = sbr.rel (0) target = $region9
    $region8: #{tpu_custom_call.1} parent=1 // pred_region
      %s29 = sadd.s32 0, 1
      %s30 = smul.u32 2, %s29
      %s32 = ssub.s32 64, 64
      %33 = vsyncadd [#allocation6], %s32
      %s34 = smul.addr %s30, 16
      %s35 = scalar_lea.hbm %s1, %s34
      %s36 = sshll.u32 [#allocation5], 4
      %s37 = int_to_ptr.vmem [resolvable:$true] %s36
      %42 = dma.hbm_to_vmem [thread:$0]  %s35, 64, %s37, [#allocation6], 128, 32, 2
    $region9: #{tpu_custom_call.1} parent=1 // pred_fallthru
      _
    // Predicated region
    $region10: #{tpu_custom_call.1} parent=1 // pred_check
      _
    $region11: #{tpu_custom_call.1} parent=1 // pred_check_branch
      %44 = sbr.rel (0) target = $region13
    $region12: #{tpu_custom_call.1} parent=1 // pred_region
      %s45 = sadd.s32 0, 2
      %s46 = smul.u32 2, %s45
      %s48 = ssub.s32 64, 64
      %49 = vsyncadd [#allocation6], %s48
      %s50 = smul.addr %s46, 16
      %s51 = scalar_lea.hbm %s2, %s50
      %s52 = sshll.u32 [#allocation7], 4
      %s53 = int_to_ptr.vmem [resolvable:$true] %s52
      %58 = dma.hbm_to_vmem [thread:$0]  %s51, 64, %s53, [#allocation6], 128, 32, 2
    $region13: #{tpu_custom_call.1} parent=1 // pred_fallthru
      _
    // Predicated region
    $region14: #{tpu_custom_call.1} parent=1 // pred_check
      _
    $region15: #{tpu_custom_call.1} parent=1 // pred_check_branch
      %60 = sbr.rel (0) target = $region17
    $region16: #{tpu_custom_call.1} parent=1 // pred_region
      %61 = dma.done [#allocation3], 64
    $region17: #{tpu_custom_call.1} parent=1 // pred_fallthru
      _
    // Predicated region
    $region18: #{tpu_custom_call.1} parent=1 // pred_check
      _
    $region19: #{tpu_custom_call.1} parent=1 // pred_check_branch
      %63 = sbr.rel (0) target = $region21
    $region20: #{tpu_custom_call.1} parent=1 // pred_region
      %64 = dma.done [#allocation6], 64
    $region21: #{tpu_custom_call.1} parent=1 // pred_fallthru
      _
    // Predicated region
    $region22: #{tpu_custom_call.1} parent=1 // pred_check
      _
    $region23: #{tpu_custom_call.1} parent=1 // pred_check_branch
      %66 = sbr.rel (0) target = $region25
    $region24: #{tpu_custom_call.1} parent=1 // pred_region
      %67 = dma.done [#allocation6], 64
    $region25: #{tpu_custom_call.1} parent=1 // pred_fallthru
      _
    %s68 = sadd.s32 0, 1
    %s69 = smul.u32 2, %s68
    %s70 = sadd.s32 0, 2
    %s71 = smul.u32 2, %s70
    %v72 = vld [vmem:[#allocation2] sm:$0x3]
    %v73 = vld [vmem:[#allocation2 + $0x2] sm:$0x3]
    %v74 = vlaneseq
    %vm75 = vcmp.ge.s32.totalorder %v74, 0
    %vm76 = vcmp.lt.s32.totalorder %v74, 256
    %vm77 = vmand %vm75, %vm76
    %78 = vst.msk [vmem:[#allocation8] sm:$0x3] %vm77, %v72
    %79 = vst.msk [vmem:[#allocation8 + $0x2] sm:$0x3] %vm77, %v73
    %v80 = vld [vmem:[#allocation5] sm:$0x3]
    %v81 = vld [vmem:[#allocation5 + $0x2] sm:$0x3]
    %82 = vst.msk [vmem:[#allocation9] sm:$0x3] %vm77, %v80
    %83 = vst.msk [vmem:[#allocation9 + $0x2] sm:$0x3] %vm77, %v81
    %v84 = vld [vmem:[#allocation7] sm:$0x3]
    %v85 = vld [vmem:[#allocation7 + $0x2] sm:$0x3]
    %v86 = vmul.f32 %v84, 1024.0
    %v87 = vmul.f32 %v85, 1024.0
    %v88 = vmul.f32 %v86, 1.442695
    %v89 = vpow.pop %v88
    %v90 = vmul.f32 %v87, 1.442695
    %v91 = vpow.pop %v90
    %v92 = vsub.f32 %v89, 1.0
    %v93 = vsub.f32 %v91, 1.0
    %94 = vst.msk [vmem:[#allocation11] sm:$0x3] %vm77, %v92
    %95 = vst.msk [vmem:[#allocation11 + $0x2] sm:$0x3] %vm77, %v93
    // Predicated region
    $region26: #{tpu_custom_call.1} parent=1 // pred_check
      _
    $region27: #{tpu_custom_call.1} parent=1 // pred_check_branch
      %97 = sbr.rel (0) target = $region29
    $region28: #{tpu_custom_call.1} parent=1 // pred_region
      %s99 = ssub.s32 64, 64
      %100 = vsyncadd [#allocation4], %s99
      %s101 = sshll.u32 [#allocation8], 4
      %s102 = int_to_ptr.vmem [resolvable:$true] %s101
      %107 = dma.vmem_to_hbm [thread:$0]  %s102, 64, %s3, [#allocation4], 32, 32, 2
    $region29: #{tpu_custom_call.1} parent=1 // pred_fallthru
      _
    // Predicated region
    $region30: #{tpu_custom_call.1} parent=1 // pred_check
      _
    $region31: #{tpu_custom_call.1} parent=1 // pred_check_branch
      %109 = sbr.rel (0) target = $region33
    $region32: #{tpu_custom_call.1} parent=1 // pred_region
      %s111 = ssub.s32 64, 64
      %112 = vsyncadd [#allocation10], %s111
      %s113 = sshll.u32 [#allocation9], 4
      %s114 = int_to_ptr.vmem [resolvable:$true] %s113
      %119 = dma.vmem_to_hbm [thread:$0]  %s114, 64, %s4, [#allocation10], 32, 32, 2
    $region33: #{tpu_custom_call.1} parent=1 // pred_fallthru
      _
    // Predicated region
    $region34: #{tpu_custom_call.1} parent=1 // pred_check
      _
    $region35: #{tpu_custom_call.1} parent=1 // pred_check_branch
      %121 = sbr.rel (0) target = $region37
    $region36: #{tpu_custom_call.1} parent=1 // pred_region
      %s123 = ssub.s32 64, 64
      %124 = vsyncadd [#allocation10], %s123
      %s125 = sshll.u32 [#allocation11], 4
      %s126 = int_to_ptr.vmem [resolvable:$true] %s125
      %131 = dma.vmem_to_hbm [thread:$0]  %s126, 64, %s5, [#allocation10], 32, 32, 2
    $region37: #{tpu_custom_call.1} parent=1 // pred_fallthru
      _
    // Predicated region
    $region38: #{tpu_custom_call.1} parent=1 // pred_check
      _
    $region39: #{tpu_custom_call.1} parent=1 // pred_check_branch
      %133 = sbr.rel (0) target = $region41
    $region40: #{tpu_custom_call.1} parent=1 // pred_region
      %134 = dma.done [#allocation4], 64
    $region41: #{tpu_custom_call.1} parent=1 // pred_fallthru
      _
    // Predicated region
    $region42: #{tpu_custom_call.1} parent=1 // pred_check
      _
    $region43: #{tpu_custom_call.1} parent=1 // pred_check_branch
      %136 = sbr.rel (0) target = $region45
    $region44: #{tpu_custom_call.1} parent=1 // pred_region
      %137 = dma.done [#allocation10], 64
    $region45: #{tpu_custom_call.1} parent=1 // pred_fallthru
      _
    // Predicated region
    $region46: #{tpu_custom_call.1} parent=1 // pred_check
      _
    $region47: #{tpu_custom_call.1} parent=1 // pred_check_branch
      %139 = sbr.rel (0) target = $region49
    $region48: #{tpu_custom_call.1} parent=1 // pred_region
      %140 = dma.done [#allocation10], 64
    $region49: #{tpu_custom_call.1} parent=1 // pred_fallthru
      _
    %141 = vsyncpa [#allocation3], 1
    %142 = vsyncpa [#allocation6], 1
    %143 = vsyncpa [#allocation4], 1
    %144 = vsyncpa [#allocation10], 1

</llo_original>
